<compile_context>
chip_gen: v7x
topology: tpu7x:2x2x1
jax: 0.10.0
libtpu: 0.0.40
codegen_flags: <defaults>
</compile_context>

<pallas_src>
import functools

import jax
import jax.numpy as jnp
from jax.experimental import pallas as pl
from jax.experimental.pallas import tpu as pltpu

# cfg.num_derivatives is an external config in the original code; fixed here.
NUM_DERIVATIVES = 2


def _derivative_aware_loss_kernel(yp_ref, yt_ref, out_ref, *, b_total,
                                  num_derivatives, use_roll):
    yp = yp_ref[...].astype(jnp.float32)
    yt = yt_ref[...].astype(jnp.float32)
    tile_b, s = yp.shape

    # Linearity of the finite difference: only (y_pred - y_true) is needed.
    d = yp - yt

    if use_roll:
        # Lane-dense path: every intermediate stays (tile_b, s); fuse the
        # per-term means into one accumulator and reduce once at the end.
        acc = (d * d) * (1.0 / (b_total * s))
        lane = jax.lax.broadcasted_iota(jnp.int32, (tile_b, s), 1)
        for k in range(1, num_derivatives + 1):
            valid = s - k
            if valid < 1:                      # PyTorch `break` (len < 2).
                break
            # Rotate left by one (rotate right by s-1): d_new[j] = d[j+1]-d[j].
            d = pltpu.roll(d, shift=s - 1, axis=1) - d
            # Zero the wrapped / invalid trailing lanes before accumulation.
            d = jnp.where(lane < valid, d, 0.0)
            acc = acc + (d * d) * (1.0 / (b_total * valid))
        total = jnp.sum(acc)
    else:
        # Fallback for small / unaligned shapes: slice-based differencing
        # (shapes are static, so the break resolves at trace time).
        total = jnp.sum(d * d) * (1.0 / (b_total * s))
        for _ in range(num_derivatives):
            if d.shape[1] < 2:
                break
            d = d[:, 1:] - d[:, :-1]
            total = total + jnp.sum(d * d) * (1.0 / (b_total * d.shape[1]))

    out_ref[...] = jnp.reshape(total, (1, 1, 1))


def _choose_tile_b(B, S, itemsize=4):
    """Largest batch tile that is a multiple of 8, divides B, and keeps the
    per-input tile around ~4 MiB (2 inputs x 2 pipeline buffers ~ 16 MiB,
    safely inside the 32 MiB scoped VMEM we request; v7x-friendly)."""
    if B % 8 != 0:
        return B                                # single full-extent block
    target_rows = max(8, (4 * 1024 * 1024) // max(1, S * itemsize))
    target_rows = min(B, (target_rows // 8) * 8)
    for t in range(target_rows, 7, -8):
        if B % t == 0:
            return t
    return B


def derivative_aware_loss(y_pred, y_true, *, num_derivatives=NUM_DERIVATIVES,
                          tile_b=None):
    assert y_pred.shape == y_true.shape and y_pred.ndim == 2
    B, S = y_pred.shape
    if tile_b is None:
        tile_b = _choose_tile_b(B, S, jnp.dtype(y_pred.dtype).itemsize)
    assert B % tile_b == 0 and (tile_b % 8 == 0 or tile_b == B), (B, tile_b)
    num_blocks = B // tile_b
    use_roll = (S % 128 == 0)

    kernel = functools.partial(
        _derivative_aware_loss_kernel,
        b_total=B, num_derivatives=num_derivatives, use_roll=use_roll)

    itemsize = jnp.dtype(y_pred.dtype).itemsize
    cost = pl.CostEstimate(
        flops=int(B * S * (4 + 5 * num_derivatives)),
        transcendentals=0,
        bytes_accessed=int(2 * B * S * itemsize + num_blocks * 4),
    )

    partials = pl.pallas_call(
        kernel,
        out_shape=jax.ShapeDtypeStruct((num_blocks, 1, 1), jnp.float32),
        grid=(num_blocks,),
        in_specs=[
            pl.BlockSpec((tile_b, S), lambda i: (i, 0)),
            pl.BlockSpec((tile_b, S), lambda i: (i, 0)),
        ],
        out_specs=pl.BlockSpec((1, 1, 1), lambda i: (i, 0, 0)),
        compiler_params=pltpu.CompilerParams(
            dimension_semantics=("parallel",),
            vmem_limit_bytes=32 * 1024 * 1024,
        ),
        cost_estimate=cost,
    )(y_pred, y_true)

    # Per-block partial sums -> scalar loss (also better f32 accumulation).
    return jnp.sum(partials)


def derivative_aware_loss_ref(y_pred, y_true, num_derivatives=NUM_DERIVATIVES):
    # Pure-JAX reference matching the PyTorch module.
    loss = jnp.mean((y_pred - y_true) ** 2)
    dp, dt = y_pred, y_true
    for _ in range(num_derivatives):
        if dp.shape[1] < 2 or dt.shape[1] < 2:
            break
        dp = dp[:, 1:] - dp[:, :-1]
        dt = dt[:, 1:] - dt[:, :-1]
        loss = loss + jnp.mean((dp - dt) ** 2)
    return loss


if __name__ == "__main__":
    key = jax.random.PRNGKey(0)
    k1, k2, k3, k4 = jax.random.split(key, 4)

    # Case 1: aligned shape, multiple batch tiles (roll+mask path, parallel
    # per-block partial sums).
    B1, S1 = 16, 128
    yp1 = jax.random.normal(k1, (B1, S1), dtype=jnp.float32)
    yt1 = jax.random.normal(k2, (B1, S1), dtype=jnp.float32)
    out1 = jax.block_until_ready(derivative_aware_loss(yp1, yt1, tile_b=8))
    ref1 = jax.block_until_ready(derivative_aware_loss_ref(yp1, yt1))
    assert jnp.allclose(out1, ref1, rtol=1e-5, atol=1e-5), (out1, ref1)

    # Case 2: small unaligned toy shape from the original test
    # (single full-extent block, slice fallback path).
    B2, S2 = 2, 16
    yp2 = jax.random.normal(k3, (B2, S2), dtype=jnp.float32)
    yt2 = jax.random.normal(k4, (B2, S2), dtype=jnp.float32)
    out2 = jax.block_until_ready(derivative_aware_loss(yp2, yt2))
    ref2 = jax.block_until_ready(derivative_aware_loss_ref(yp2, yt2))
    assert jnp.allclose(out2, ref2, rtol=1e-5, atol=1e-5), (out2, ref2)

    print("KERNEL_OK")
</pallas_src>

<mosaic_0001>
module attributes {stable_mosaic.version = 11 : i64} {
  func.func @_derivative_aware_loss_kernel(%arg0: i32, %arg1: memref<8x128xf32, #tpu.memory_space<vmem>>, %arg2: memref<8x128xf32, #tpu.memory_space<vmem>>, %arg3: memref<1x1x1xf32, #tpu.memory_space<vmem>>) attributes {dimension_semantics = [#tpu.dimension_semantics<parallel>], iteration_bounds = array<i64: 2>, scalar_prefetch = 0 : i64, scratch_operands = 0 : i64, tpu.core_type = #tpu.core_type<tc>, window_params = [{transform_indices = @transform_0, window_bounds = array<i64: 8, 128>}, {transform_indices = @transform_1, window_bounds = array<i64: 8, 128>}, {transform_indices = @transform_2, window_bounds = array<i64: 1, 1, 1>}]} {
    %c0 = arith.constant 0 : index
    %c0_0 = arith.constant 0 : index
    %0 = vector.load %arg1[%c0, %c0_0] : memref<8x128xf32, #tpu.memory_space<vmem>>, vector<8x128xf32>
    %c0_1 = arith.constant 0 : index
    %c0_2 = arith.constant 0 : index
    %1 = vector.load %arg2[%c0_1, %c0_2] : memref<8x128xf32, #tpu.memory_space<vmem>>, vector<8x128xf32>
    %2 = arith.subf %0, %1 : vector<8x128xf32>
    %3 = arith.mulf %2, %2 : vector<8x128xf32>
    %cst = arith.constant 4.8828125E-4 : f32
    %4 = vector.broadcast %cst : f32 to vector<8x128xf32>
    %5 = arith.mulf %3, %4 : vector<8x128xf32>
    %6 = tpu.iota {dimensions = array<i32: 1>} : vector<8x128xi32>
    %c127_i32 = arith.constant 127 : i32
    %7 = tpu.dynamic_rotate %2 by %c127_i32 dim 1 : vector<8x128xf32>, i32 -> vector<8x128xf32>
    %8 = arith.subf %7, %2 : vector<8x128xf32>
    %c127_i32_3 = arith.constant 127 : i32
    %9 = vector.broadcast %c127_i32_3 : i32 to vector<8x128xi32>
    %10 = arith.cmpi slt, %6, %9 : vector<8x128xi32>
    %cst_4 = arith.constant 0.000000e+00 : f32
    %11 = vector.broadcast %cst_4 : f32 to vector<8x128xf32>
    %12 = arith.select %10, %8, %11 : vector<8x128xi1>, vector<8x128xf32>
    %13 = arith.mulf %12, %12 : vector<8x128xf32>
    %cst_5 = arith.constant 4.921260e-04 : f32
    %14 = vector.broadcast %cst_5 : f32 to vector<8x128xf32>
    %15 = arith.mulf %13, %14 : vector<8x128xf32>
    %16 = arith.addf %5, %15 : vector<8x128xf32>
    %c127_i32_6 = arith.constant 127 : i32
    %17 = tpu.dynamic_rotate %12 by %c127_i32_6 dim 1 : vector<8x128xf32>, i32 -> vector<8x128xf32>
    %18 = arith.subf %17, %12 : vector<8x128xf32>
    %c126_i32 = arith.constant 126 : i32
    %19 = vector.broadcast %c126_i32 : i32 to vector<8x128xi32>
    %20 = arith.cmpi slt, %6, %19 : vector<8x128xi32>
    %cst_7 = arith.constant 0.000000e+00 : f32
    %21 = vector.broadcast %cst_7 : f32 to vector<8x128xf32>
    %22 = arith.select %20, %18, %21 : vector<8x128xi1>, vector<8x128xf32>
    %23 = arith.mulf %22, %22 : vector<8x128xf32>
    %cst_8 = arith.constant 4.96031775E-4 : f32
    %24 = vector.broadcast %cst_8 : f32 to vector<8x128xf32>
    %25 = arith.mulf %23, %24 : vector<8x128xf32>
    %26 = arith.addf %16, %25 : vector<8x128xf32>
    %27 = vector.shape_cast %26 : vector<8x128xf32> to vector<1x8x128xf32>
    %cst_9 = arith.constant dense<0.000000e+00> : vector<1xf32>
    %28 = vector.multi_reduction <add>, %27, %cst_9 [1, 2] : vector<1x8x128xf32> to vector<1xf32>
    %29 = vector.shape_cast %28 : vector<1xf32> to vector<1x1x1xf32>
    %30 = vector.extract %29[0, 0, 0] : f32 from vector<1x1x1xf32>
    %31 = vector.broadcast %30 : f32 to vector<1x1x1xf32>
    %c0_10 = arith.constant 0 : index
    %c0_11 = arith.constant 0 : index
    %c0_12 = arith.constant 0 : index
    %32 = vector.load %arg3[%c0_10, %c0_11, %c0_12] : memref<1x1x1xf32, #tpu.memory_space<vmem>>, vector<1x1x1xf32>
    tpu.vector_store %arg3[%c0_10, %c0_11, %c0_12], %31 {strides = array<i32>} : memref<1x1x1xf32, #tpu.memory_space<vmem>>, vector<1x1x1xf32>,
    return
  }
  func.func @transform_0(%arg0: i32) -> (i32, i32) {
    %c0_i32 = arith.constant 0 : i32
    %c0_i32_0 = arith.constant 0 : i32
    return %arg0, %c0_i32 : i32, i32
  }
  func.func @transform_1(%arg0: i32) -> (i32, i32) {
    %c0_i32 = arith.constant 0 : i32
    %c0_i32_0 = arith.constant 0 : i32
    return %arg0, %c0_i32 : i32, i32
  }
  func.func @transform_2(%arg0: i32) -> (i32, i32, i32) {
    %c0_i32 = arith.constant 0 : i32
    %c0_i32_0 = arith.constant 0 : i32
    %c0_i32_1 = arith.constant 0 : i32
    return %arg0, %c0_i32, %c0_i32_0 : i32, i32, i32
  }
}

</mosaic_0001>

<llo_original>
// kernel: tpu_custom_call.1
$region0: #{tpu_custom_call.1}
  #allocation0 [shape = 'u32[]', space=smem, size = 0x4, offset = 0x4, fixed_abs, tag = 'smem constant byte address 0x4 - core index']
  #allocation1 [shape = 'u32[144,128]{1,0:T(1,128)}', space=vmem, size = 0x12000, scoped, tag = 'internal scratch']
  %s0 = inlined_call_operand.hbm [shape: f32[16,128], index: 0, kind: input, shape index: {}]
  %s1 = inlined_call_operand.hbm [shape: f32[16,128], index: 1, kind: input, shape index: {}]
  %s2 = inlined_call_operand.vmem [shape: f32[2,1,1], index: 2, kind: output, shape index: {}]
  %s3 = sld [smem:[#allocation0]]
  $region49: #{tpu_custom_call.1} parent=0
    _
  %s5 = ssub.s32 1, %s3
  %s6 = scalar_select 0, %s5, %s3
  $region1: #{tpu_custom_call.1} parent=0
    #allocation2 [shape = 'u8[8192]{0}', space=vmem, size = 0x2000, scoped, tag = 'input window, operand 0']
    #allocation3 [shape = 's32[2]{0}', space=sflag, size = 0x8, scoped, tag = 'scoped memory for tpu_custom_call.1']
    #allocation4 [shape = 'u8[8192]{0}', space=vmem, size = 0x2000, scoped, tag = 'input window, operand 1']
    #allocation5 [shape = 's32[2]{0}', space=sflag, size = 0x8, scoped, tag = 'scoped memory for tpu_custom_call.1']
    %7 = vsyncpa [#allocation3], 0
    %s8 = scalar_lea.sflag [#allocation3], 1
    %9 = vsyncpa %s8, 0
    %10 = vsyncpa [#allocation5], 0
    %s11 = scalar_lea.sflag [#allocation5], 1
    %12 = vsyncpa %s11, 0
    loop: start=0, step=1, limit=4
    $region2: #{tpu_custom_call.1} parent=1 // loop_pre_header
      _
    $region3: #{tpu_custom_call.1} parent=1 // loop_header
      %s14 = sphi 0, %s18
      %p15 = scmp.ge.s32.totalorder %s14, 4
      %s24 = sphi 0, %s26
      %s27 = sphi 0, %s24
      %s28 = sphi 0, %s27
      %s44 = sphi 0, %s28
      %s50 = sphi 0, %s52
      %s53 = sphi 0, %s50
      %s54 = sphi 0, %s53
      %s70 = sphi 0, %s54
      %s76 = sphi 0, %s78
      %s79 = sphi 0, %s76
      %s80 = sphi 0, %s79
      %s96 = sphi 0, %s80
    $region4: #{tpu_custom_call.1} parent=1 // loop_header_branch
      %17 = sbr.rel (%p15) target = $region8
    $region5: #{tpu_custom_call.1} parent=1 // loop_body
      %s19 = ssub.s32 %s14, 1
      %s20 = ssub.s32 %s14, 2
      %s21 = sadd.s32 %s14, 1
      %s22 = ssub.s32 %s14, %s21
      %p23 = scmp.eq.s32.totalorder %s22, 0
      %s25 = sadd.s32 %s24, 1
      %s26 = scalar_select %p23, %s24, %s25
      %p29 = pneg %p23
      %p30 = scmp.eq.s32.totalorder %s14, 1
      %p31 = por %p29, %p30
      %p32 = scmp.ne.s32.totalorder %s24, %s27
      %p33 = scmp.eq.s32.totalorder %s14, 0
      %p34 = por %p32, %p33
      %p35 = scmp.ne.s32.totalorder %s24, %s27
      %p36 = scmp.eq.s32.totalorder %s19, 1
      %p37 = por %p35, %p36
      %p38 = scmp.ne.s32.totalorder %s27, %s28
      %p39 = scmp.eq.s32.totalorder %s19, 0
      %p40 = por %p38, %p39
      %p41 = scmp.ne.s32.totalorder %s27, %s28
      %p42 = scmp.eq.s32.totalorder %s20, 1
      %p43 = por %p41, %p42
      %p45 = scmp.ne.s32.totalorder %s28, %s44
      %p46 = scmp.eq.s32.totalorder %s20, 0
      %p47 = por %p45, %p46
      %s48 = ssub.s32 %s14, %s21
      %p49 = scmp.eq.s32.totalorder %s48, 0
      %s51 = sadd.s32 %s50, 1
      %s52 = scalar_select %p49, %s50, %s51
      %p55 = pneg %p49
      %p56 = scmp.eq.s32.totalorder %s14, 1
      %p57 = por %p55, %p56
      %p58 = scmp.ne.s32.totalorder %s50, %s53
      %p59 = scmp.eq.s32.totalorder %s14, 0
      %p60 = por %p58, %p59
      %p61 = scmp.ne.s32.totalorder %s50, %s53
      %p62 = scmp.eq.s32.totalorder %s19, 1
      %p63 = por %p61, %p62
      %p64 = scmp.ne.s32.totalorder %s53, %s54
      %p65 = scmp.eq.s32.totalorder %s19, 0
      %p66 = por %p64, %p65
      %p67 = scmp.ne.s32.totalorder %s53, %s54
      %p68 = scmp.eq.s32.totalorder %s20, 1
      %p69 = por %p67, %p68
      %p71 = scmp.ne.s32.totalorder %s54, %s70
      %p72 = scmp.eq.s32.totalorder %s20, 0
      %p73 = por %p71, %p72
      %s74 = ssub.s32 %s14, %s21
      %p75 = scmp.eq.s32.totalorder %s74, 0
      %s77 = sadd.s32 %s76, 1
      %s78 = scalar_select %p75, %s76, %s77
      %p81 = pneg %p75
      %p82 = scmp.eq.s32.totalorder %s14, 1
      %p83 = por %p81, %p82
      %p84 = scmp.ne.s32.totalorder %s76, %s79
      %p85 = scmp.eq.s32.totalorder %s14, 0
      %p86 = por %p84, %p85
      %p87 = scmp.ne.s32.totalorder %s76, %s79
      %p88 = scmp.eq.s32.totalorder %s19, 1
      %p89 = por %p87, %p88
      %p90 = scmp.ne.s32.totalorder %s79, %s80
      %p91 = scmp.eq.s32.totalorder %s19, 0
      %p92 = por %p90, %p91
      %p93 = scmp.ne.s32.totalorder %s79, %s80
      %p94 = scmp.eq.s32.totalorder %s20, 1
      %p95 = por %p93, %p94
      %p97 = scmp.ne.s32.totalorder %s80, %s96
      %p98 = scmp.eq.s32.totalorder %s20, 0
      %p99 = por %p97, %p98
      %p100 = scmp.le.s32.totalorder 1, %s14
      %p101 = scmp.lt.s32.totalorder %s14, 3
      %p102 = pnand %p100, %p101
      %p103 = pneg %p102
      // Predicated region
      $region9: #{tpu_custom_call.1} parent=5 // pred_check
        _
      $region10: #{tpu_custom_call.1} parent=5 // pred_check_branch
        %105 = sbr.rel (%p102) target = $region12
      $region11: #{tpu_custom_call.1} parent=5 // pred_region
        %s106 = ssub.s32 %s14, 1
      $region12: #{tpu_custom_call.1} parent=5 // pred_fallthru
        _
      %p107 = scmp.lt.s32.totalorder %s14, 2
      // Predicated region
      $region13: #{tpu_custom_call.1} parent=5 // pred_check
        %p108 = pneg %p107
      $region14: #{tpu_custom_call.1} parent=5 // pred_check_branch
        %110 = sbr.rel (%p108) target = $region16
      $region15: #{tpu_custom_call.1} parent=5 // pred_region
        // Predicated region
        $region17: #{tpu_custom_call.1} parent=15 // pred_check
          %p111 = pneg %p34
        $region18: #{tpu_custom_call.1} parent=15 // pred_check_branch
          %113 = sbr.rel (%p111) target = $region20
        $region19: #{tpu_custom_call.1} parent=15 // pred_region
          %s114 = sand.u32 %s24, 1
          %s115 = scalar_lea.sflag [#allocation3], %s114
          %s116 = sand.u32 %s24, 1
          %s117 = smul.addr %s116, 8
          %s118 = scalar_lea.vmem [#allocation2], %s117
          %s120 = ssub.s32 128, 128
          %121 = vsyncadd %s115, %s120
          %s122 = smul.addr %s14, 128
          %s123 = scalar_lea.hbm %s0, %s122
          %s125 = sshll.u32 %s118, 4
          %s126 = int_to_ptr.vmem [resolvable:$true] %s125
          %128 = dma.hbm_to_vmem [thread:$0]  %s123, 128, %s126, %s115
        $region20: #{tpu_custom_call.1} parent=15 // pred_fallthru
          _
        // Predicated region
        $region21: #{tpu_custom_call.1} parent=15 // pred_check
          %p129 = pneg %p60
        $region22: #{tpu_custom_call.1} parent=15 // pred_check_branch
          %131 = sbr.rel (%p129) target = $region24
        $region23: #{tpu_custom_call.1} parent=15 // pred_region
          %s132 = sand.u32 %s50, 1
          %s133 = scalar_lea.sflag [#allocation5], %s132
          %s134 = sand.u32 %s50, 1
          %s135 = smul.addr %s134, 8
          %s136 = scalar_lea.vmem [#allocation4], %s135
          %s138 = ssub.s32 128, 128
          %139 = vsyncadd %s133, %s138
          %s140 = smul.addr %s14, 128
          %s141 = scalar_lea.hbm %s1, %s140
          %s143 = sshll.u32 %s136, 4
          %s144 = int_to_ptr.vmem [resolvable:$true] %s143
          %146 = dma.hbm_to_vmem [thread:$0]  %s141, 128, %s144, %s133
        $region24: #{tpu_custom_call.1} parent=15 // pred_fallthru
          _
      $region16: #{tpu_custom_call.1} parent=5 // pred_fallthru
        _
      %p147 = scmp.le.s32.totalorder 1, %s14
      %p148 = scmp.lt.s32.totalorder %s14, 3
      %p149 = pnand %p147, %p148
      %p150 = pneg %p149
      // Predicated region
      $region25: #{tpu_custom_call.1} parent=5 // pred_check
        _
      $region26: #{tpu_custom_call.1} parent=5 // pred_check_branch
        %152 = sbr.rel (%p149) target = $region28
      $region27: #{tpu_custom_call.1} parent=5 // pred_region
        %s153 = ssub.s32 %s14, 1
        %s154 = sand.u32 %s27, 1
        %s155 = scalar_lea.sflag [#allocation3], %s154
        %s156 = sand.u32 %s27, 1
        %s157 = smul.addr %s156, 8
        %s158 = scalar_lea.vmem [#allocation2], %s157
        // Predicated region
        $region29: #{tpu_custom_call.1} parent=27 // pred_check
          %p159 = pneg %p40
        $region30: #{tpu_custom_call.1} parent=27 // pred_check_branch
          %161 = sbr.rel (%p159) target = $region32
        $region31: #{tpu_custom_call.1} parent=27 // pred_region
          %162 = dma.done %s155, 128
        $region32: #{tpu_custom_call.1} parent=27 // pred_fallthru
          _
        %s163 = sand.u32 %s53, 1
        %s164 = scalar_lea.sflag [#allocation5], %s163
        %s165 = sand.u32 %s53, 1
        %s166 = smul.addr %s165, 8
        %s167 = scalar_lea.vmem [#allocation4], %s166
        // Predicated region
        $region33: #{tpu_custom_call.1} parent=27 // pred_check
          %p168 = pneg %p66
        $region34: #{tpu_custom_call.1} parent=27 // pred_check_branch
          %170 = sbr.rel (%p168) target = $region36
        $region35: #{tpu_custom_call.1} parent=27 // pred_region
          %171 = dma.done %s164, 128
        $region36: #{tpu_custom_call.1} parent=27 // pred_fallthru
          _
        %s172 = sand.u32 %s27, 1
        %s173 = scalar_lea.sflag [#allocation3], %s172
        %s174 = sand.u32 %s27, 1
        %s175 = smul.addr %s174, 8
        %s176 = scalar_lea.vmem [#allocation2], %s175
        %p177 = pneg %p40
        %p178 = pneg %p37
        %s179 = sand.u32 %s53, 1
        %s180 = scalar_lea.sflag [#allocation5], %s179
        %s181 = sand.u32 %s53, 1
        %s182 = smul.addr %s181, 8
        %s183 = scalar_lea.vmem [#allocation4], %s182
        %p184 = pneg %p66
        %p185 = pneg %p63
        %p186 = pneg %p92
        %p187 = pneg %p89
        %p188 = scmp.lt.s32.totalorder %s19, 1
        %s189 = scalar_select %p188, %s19, 1
        %s190 = scalar_lea.vmem %s2, %s189
        %p191 = scmp.lt.s32.totalorder %s19, 1
        %s192 = scalar_select %p191, %s19, 1
        %s193 = scalar_lea.vmem %s2, %s192
        %v194 = vld [vmem:[%s158] sm:$0xff]
        %v195 = vld [vmem:[%s167] sm:$0xff]
        %v196 = vsub.f32 %v194, %v195
        %v197 = vmul.f32 %v196, %v196
        %v198 = vmul.f32 %v197, 0.00048828125
        %v199 = vlaneseq
        %v200 = vand.u32 %v199, 127
        %201 = vrot.lane.b32.xlu0 %v196, 127
        %v202 = vpop.permute.xlu0 %201
        %v203 = vsub.f32 %v202, %v196
        %vm204 = vcmp.lt.s32.totalorder %v200, 127
        %v205 = vsel %vm204, %v203, 0.0
        %v206 = vmul.f32 %v205, %v205
        %v207 = vmul.f32 %v206, 0.000492126
        %v208 = vadd.f32 %v198, %v207
        %209 = vrot.lane.b32.xlu0 %v205, 127
        %v210 = vpop.permute.xlu0 %209
        %v211 = vsub.f32 %v210, %v205
        %vm212 = vcmp.lt.s32.totalorder %v200, 126
        %v213 = vsel %vm212, %v211, 0.0
        %v214 = vmul.f32 %v213, %v213
        %v215 = vmul.f32 %v214, 0.0004960318
        %v216 = vadd.f32 %v208, %v215
        %217 = vadd.xlane.f32.xlu0 %v216
        %v218 = vpop.xlane.xlu0 %217
        %v219 = vrot.slane %v218, 4
        %v220 = vadd.f32 %v218, %v219
        %v221 = vrot.slane %v220, 2
        %v222 = vadd.f32 %v220, %v221
        %v223 = vrot.slane %v222, 1
        %v224 = vadd.f32 %v222, %v223
        %s225 = vtos %v224
        %v226 = vstv %s225
        %vm227 = vcmask 0
        %228 = vst.msk [vmem:[%s193] sm:$0x1] %vm227, %v226
        %p229 = scmp.lt.s32.totalorder %s19, 1
        %s230 = scalar_select %p229, %s19, 1
        %s231 = scalar_lea.vmem %s2, %s230
        // Predicated region
        $region37: #{tpu_custom_call.1} parent=27 // pred_check
          %p232 = pneg %p89
        $region38: #{tpu_custom_call.1} parent=27 // pred_check_branch
          %234 = sbr.rel (%p232) target = $region40
        $region39: #{tpu_custom_call.1} parent=27 // pred_region
          _
        $region40: #{tpu_custom_call.1} parent=27 // pred_fallthru
          _
      $region28: #{tpu_custom_call.1} parent=5 // pred_fallthru
        _
      %p235 = scmp.le.s32.totalorder 2, %s14
      // Predicated region
      $region41: #{tpu_custom_call.1} parent=5 // pred_check
        %p236 = pneg %p235
      $region42: #{tpu_custom_call.1} parent=5 // pred_check_branch
        %238 = sbr.rel (%p236) target = $region44
      $region43: #{tpu_custom_call.1} parent=5 // pred_region
        %s239 = ssub.s32 %s14, 2
        // Predicated region
        $region45: #{tpu_custom_call.1} parent=43 // pred_check
          %p240 = pneg %p95
        $region46: #{tpu_custom_call.1} parent=43 // pred_check_branch
          %242 = sbr.rel (%p240) target = $region48
        $region47: #{tpu_custom_call.1} parent=43 // pred_region
          %p243 = scmp.lt.s32.totalorder %s20, 1
          %s244 = scalar_select %p243, %s20, 1
          %s245 = scalar_lea.vmem %s2, %s244
        $region48: #{tpu_custom_call.1} parent=43 // pred_fallthru
          _
      $region44: #{tpu_custom_call.1} parent=5 // pred_fallthru
        _
    $region6: #{tpu_custom_call.1} parent=1 // loop_footer
      %s18 = sadd.s32 1, %s14
    $region7: #{tpu_custom_call.1} parent=1 // loop_footer_branch
      %13 = sbr.rel target = $region3
    $region8: #{tpu_custom_call.1} parent=1 // loop_exit
      _
    %246 = vsyncpa [#allocation3], 1
    %s247 = scalar_lea.sflag [#allocation3], 1
    %248 = vsyncpa %s247, 1
    %249 = vsyncpa [#allocation5], 1
    %s250 = scalar_lea.sflag [#allocation5], 1
    %251 = vsyncpa %s250, 1

</llo_original>
